<compile_context>
chip_gen: v7x
topology: tpu7x:2x2x1
jax: 0.10.0
libtpu: 0.0.40
codegen_flags: <defaults>
</compile_context>

<pallas_src>
import functools

import jax
import jax.numpy as jnp
from jax.experimental import pallas as pl
from jax.experimental.pallas import tpu as pltpu


def _round_up(n, m):
    return ((n + m - 1) // m) * m


def _pad2d(a, rows, cols):
    return jnp.pad(a, ((0, rows - a.shape[0]), (0, cols - a.shape[1])))


def _pick_tb(bp, cap, step):
    """Largest batch-tile <= cap (multiple of `step`) that divides bp (bp % step == 0)."""
    tb = min(bp, cap)
    tb = max((tb // step) * step, step)
    while bp % tb:
        tb -= step
    return tb


def _sigmoid(x, approx):
    # exp on the EUP; reciprocal either exact (strict f32 path) or EUP vrcp (bf16 path).
    return pl.reciprocal(1.0 + jnp.exp(-x), approx=approx)


def vae_kernel(
    x_ref, eps_ref,
    w_enc_ref, b_enc_ref,
    w_ml_ref, b_ml_ref,        # fused [mu | logvar] projection
    b_d1_ref, b_d2_ref,
    w_d1_hbm, w_d2_hbm,        # decoder weights, left in HBM (memory_space=pl.ANY)
    out_ref,                   # lane-dense slab: [pred | mu | var]
    w_d1_vmem, w_d2_vmem, dma_sem,
    *, Dp, Lp, approx,
):
    # Kick off decoder-weight DMA immediately; it runs in the background while the
    # encoder matmuls execute (single-buffered scratch, so no pipeline double-buffer).
    cp_d1 = pltpu.make_async_copy(w_d1_hbm, w_d1_vmem, dma_sem.at[0])
    cp_d2 = pltpu.make_async_copy(w_d2_hbm, w_d2_vmem, dma_sem.at[1])
    cp_d1.start()
    cp_d2.start()

    cdt = w_enc_ref.dtype      # MXU operand dtype (f32, or bf16)
    x = x_ref[...].astype(cdt)                                     # (TB, Dp)

    # ---- Encoder ----
    h = _sigmoid(
        jnp.dot(x, w_enc_ref[...], preferred_element_type=jnp.float32)
        + b_enc_ref[...],
        approx,
    )                                                              # (TB, Hp) f32
    ml = (
        jnp.dot(h.astype(cdt), w_ml_ref[...], preferred_element_type=jnp.float32)
        + b_ml_ref[...]
    )                                                              # (TB, 2*Lp) f32
    z_mu = ml[:, :Lp]
    z_logvar = ml[:, Lp:]

    # ---- Reparameterization (eps supplied from outside; see TODO in wrapper) ----
    z_var = jnp.exp(z_logvar) + 1e-05
    std = jnp.sqrt(z_var)
    x_sample = eps_ref[...] * std + z_mu                           # (TB, Lp) f32

    # ---- Decoder (wait for each weight right before its matmul) ----
    cp_d1.wait()
    h2 = _sigmoid(
        jnp.dot(x_sample.astype(cdt), w_d1_vmem[...], preferred_element_type=jnp.float32)
        + b_d1_ref[...],
        approx,
    )                                                              # (TB, Hp) f32
    cp_d2.wait()
    pred = _sigmoid(
        jnp.dot(h2.astype(cdt), w_d2_vmem[...], preferred_element_type=jnp.float32)
        + b_d2_ref[...],
        approx,
    )                                                              # (TB, Dp) f32

    # Lane-dense packed output (all offsets are multiples of 128 -> unmasked stores).
    out_ref[:, :Dp] = pred.astype(out_ref.dtype)
    out_ref[:, Dp:Dp + Lp] = z_mu.astype(out_ref.dtype)
    out_ref[:, Dp + Lp:] = z_var.astype(out_ref.dtype)


def prepare_vae_params(params, *, use_bf16_matmul=False):
    """Pad / fuse / cast the weights ONCE (keep the result and reuse it across calls)."""
    D_in, H = params["w_enc"].shape
    L = params["w_mu"].shape[1]
    Dp, Hp, Lp = _round_up(D_in, 128), _round_up(H, 128), _round_up(L, 128)
    wdt = jnp.bfloat16 if use_bf16_matmul else jnp.float32

    prep = dict(
        w_enc=_pad2d(params["w_enc"], Dp, Hp).astype(wdt),
        b_enc=_pad2d(params["b_enc"], 1, Hp).astype(jnp.float32),
        w_ml=jnp.concatenate(
            [_pad2d(params["w_mu"], Hp, Lp), _pad2d(params["w_lv"], Hp, Lp)], axis=1
        ).astype(wdt),
        b_ml=jnp.concatenate(
            [_pad2d(params["b_mu"], 1, Lp), _pad2d(params["b_lv"], 1, Lp)], axis=1
        ).astype(jnp.float32),
        w_d1=_pad2d(params["w_d1"], Lp, Hp).astype(wdt),
        b_d1=_pad2d(params["b_d1"], 1, Hp).astype(jnp.float32),
        w_d2=_pad2d(params["w_d2"], Hp, Dp).astype(wdt),
        b_d2=_pad2d(params["b_d2"], 1, Dp).astype(jnp.float32),
    )
    return jax.block_until_ready(prep)


@functools.partial(
    jax.jit, static_argnames=("max_rows_per_step", "approx_recip", "out_dtype")
)
def vae_forward(x, eps, prep, *, max_rows_per_step=256, approx_recip=False,
                out_dtype=jnp.float32):
    """x: (B, input_dim) f32, eps: (B, latent_dim) f32, prep: prepare_vae_params(...).

    Returns (pred, z_mu, z_var) with original (unpadded) shapes, f32.
    """
    B, D_in = x.shape
    L = eps.shape[1]
    Dp, Hp = prep["w_enc"].shape
    Lp = prep["w_d1"].shape[0]
    W_out = Dp + 2 * Lp
    wdt = prep["w_enc"].dtype

    # bf16 operands pack 16 rows per sublane group -> align batch rows to 16 in that path.
    row_align = 16 if wdt == jnp.bfloat16 else 8
    Bp = _round_up(B, row_align)
    # Cap the batch tile at 256 rows (sweet spot: weights are resident, larger tiles only
    # bloat the chained f32 intermediates), and make sure larger batches get >=2 "parallel"
    # grid steps so both v7x TensorCores are used.
    cap = max(min(max_rows_per_step, max(128, Bp // 2)), row_align)
    tb = _pick_tb(Bp, cap, row_align)

    x_p = _pad2d(x.astype(jnp.float32), Bp, Dp)
    eps_p = _pad2d(eps.astype(jnp.float32), Bp, Lp)

    kernel = functools.partial(vae_kernel, Dp=Dp, Lp=Lp, approx=approx_recip)

    full = lambda shape: pl.BlockSpec(shape, lambda i: (0, 0))
    batched = lambda w: pl.BlockSpec((tb, w), lambda i: (i, 0))

    # Explicit VMEM budget -> scoped-VMEM limit (covers v5e's 16 MiB default, safe on v7x).
    w_item = jnp.dtype(wdt).itemsize
    o_item = jnp.dtype(out_dtype).itemsize
    weight_bytes = (Dp * Hp + Hp * 2 * Lp) * w_item * 2 + (Lp * Hp + Hp * Dp) * w_item
    bias_bytes = (2 * Hp + 2 * Lp + Dp) * 4 * 2
    io_bytes = 2 * tb * (Dp + Lp) * 4 + 2 * tb * W_out * o_item
    interm_bytes = tb * (2 * Hp + 4 * Lp + Dp) * 4
    est = weight_bytes + bias_bytes + io_bytes + interm_bytes
    vmem_limit = int(min(64 << 20, max(16 << 20, 2 * est)))

    out = pl.pallas_call(
        kernel,
        out_shape=jax.ShapeDtypeStruct((Bp, W_out), out_dtype),
        grid_spec=pltpu.PrefetchScalarGridSpec(
            num_scalar_prefetch=0,
            grid=(Bp // tb,),
            in_specs=[
                batched(Dp),                            # x
                batched(Lp),                            # eps
                full((Dp, Hp)), full((1, Hp)),          # encoder.linear
                full((Hp, 2 * Lp)), full((1, 2 * Lp)),  # fused encoder.mu|logvar
                full((1, Hp)),                          # decoder.latent_to_hidden bias
                full((1, Dp)),                          # decoder.hidden_to_out bias
                pl.BlockSpec(memory_space=pl.ANY),      # w_d1 (manual DMA)
                pl.BlockSpec(memory_space=pl.ANY),      # w_d2 (manual DMA)
            ],
            out_specs=batched(W_out),
            scratch_shapes=[
                pltpu.VMEM((Lp, Hp), wdt),              # w_d1 staging (single buffer)
                pltpu.VMEM((Hp, Dp), wdt),              # w_d2 staging (single buffer)
                pltpu.SemaphoreType.DMA((2,)),
            ],
        ),
        compiler_params=pltpu.CompilerParams(
            dimension_semantics=("parallel",),
            vmem_limit_bytes=vmem_limit,
        ),
    )(x_p, eps_p, prep["w_enc"], prep["b_enc"], prep["w_ml"], prep["b_ml"],
      prep["b_d1"], prep["b_d2"], prep["w_d1"], prep["w_d2"])

    pred = out[:B, :D_in].astype(jnp.float32)
    z_mu = out[:B, Dp:Dp + L].astype(jnp.float32)
    z_var = out[:B, Dp + Lp:Dp + Lp + L].astype(jnp.float32)
    return pred, z_mu, z_var


def init_params(key, input_dim, hidden_dim, latent_dim):
    """Deterministic synthetic parameters (nn.Linear shapes, stored transposed)."""
    ks = jax.random.split(key, 10)

    def lin(kw, kb, fan_in, fan_out):
        bound = 1.0 / jnp.sqrt(fan_in)
        w = jax.random.uniform(kw, (fan_in, fan_out), jnp.float32, -bound, bound)
        b = jax.random.uniform(kb, (1, fan_out), jnp.float32, -bound, bound)
        return w, b

    w_enc, b_enc = lin(ks[0], ks[1], input_dim, hidden_dim)
    w_mu, b_mu = lin(ks[2], ks[3], hidden_dim, latent_dim)
    w_lv, b_lv = lin(ks[4], ks[5], hidden_dim, latent_dim)
    w_d1, b_d1 = lin(ks[6], ks[7], latent_dim, hidden_dim)
    w_d2, b_d2 = lin(ks[8], ks[9], hidden_dim, input_dim)
    return dict(
        w_enc=w_enc, b_enc=b_enc, w_mu=w_mu, b_mu=b_mu,
        w_lv=w_lv, b_lv=b_lv, w_d1=w_d1, b_d1=b_d1, w_d2=w_d2, b_d2=b_d2,
    )


def vae_ref(x, eps, p):
    """Pure-JAX reference mirroring the PyTorch forward."""
    h = jax.nn.sigmoid(x @ p["w_enc"] + p["b_enc"])
    mu = h @ p["w_mu"] + p["b_mu"]
    logvar = h @ p["w_lv"] + p["b_lv"]
    var = jnp.exp(logvar) + 1e-05
    z = eps * jnp.sqrt(var) + mu
    h2 = jax.nn.sigmoid(z @ p["w_d1"] + p["b_d1"])
    pred = jax.nn.sigmoid(h2 @ p["w_d2"] + p["b_d2"])
    return pred, mu, var


if __name__ == "__main__":
    input_dim, hidden_dim, latent_dim = 64, 32, 20
    batch = 16

    key = jax.random.PRNGKey(0)
    k_x, k_eps, k_p = jax.random.split(key, 3)

    x = jax.random.uniform(k_x, (batch, input_dim), jnp.float32)
    # TODO(synk): torch.randn_like(std) inside forward is replaced by a deterministic,
    # externally supplied eps (same distribution; keeps the kernel reproducible).
    eps = jax.random.normal(k_eps, (batch, latent_dim), jnp.float32)
    params = init_params(k_p, input_dim, hidden_dim, latent_dim)

    pred_r, mu_r, var_r = vae_ref(x, eps, params)

    # f32 path: exact forward semantics (1e-5 tolerance). Weight prep done once.
    prep_f32 = prepare_vae_params(params, use_bf16_matmul=False)
    pred, z_mu, z_var = vae_forward(x, eps, prep_f32)
    jax.block_until_ready((pred, z_mu, z_var))
    assert jnp.allclose(pred, pred_r, atol=1e-5, rtol=1e-5)
    assert jnp.allclose(z_mu, mu_r, atol=1e-5, rtol=1e-5)
    assert jnp.allclose(z_var, var_r, atol=1e-5, rtol=1e-5)

    # Second call reuses the compiled executable and the prepared weights (hot path).
    pred2, _, _ = vae_forward(x, eps, prep_f32)
    jax.block_until_ready(pred2)

    # bf16 MXU-operand path (v5e/v6e/v7x), f32 accumulation, approx EUP reciprocal.
    prep_bf16 = prepare_vae_params(params, use_bf16_matmul=True)
    pred_b, mu_b, var_b = vae_forward(x, eps, prep_bf16, approx_recip=True)
    jax.block_until_ready((pred_b, mu_b, var_b))
    assert jnp.allclose(pred_b, pred_r, atol=5e-2, rtol=5e-2)
    assert jnp.allclose(mu_b, mu_r, atol=5e-2, rtol=5e-2)
    assert jnp.allclose(var_b, var_r, atol=5e-2, rtol=5e-2)

    print("KERNEL_OK")
</pallas_src>

<mosaic_0001>
module attributes {stable_mosaic.version = 11 : i64} {
  func.func @vae_kernel(%arg0: i32, %arg1: memref<16x128xf32, #tpu.memory_space<vmem>>, %arg2: memref<16x128xf32, #tpu.memory_space<vmem>>, %arg3: memref<128x128xf32, #tpu.memory_space<vmem>>, %arg4: memref<1x128xf32, #tpu.memory_space<vmem>>, %arg5: memref<128x256xf32, #tpu.memory_space<vmem>>, %arg6: memref<1x256xf32, #tpu.memory_space<vmem>>, %arg7: memref<1x128xf32, #tpu.memory_space<vmem>>, %arg8: memref<1x128xf32, #tpu.memory_space<vmem>>, %arg9: memref<128x128xf32, #tpu.memory_space<any>>, %arg10: memref<128x128xf32, #tpu.memory_space<any>>, %arg11: memref<16x384xf32, #tpu.memory_space<vmem>>, %arg12: memref<128x128xf32, #tpu.memory_space<vmem>>, %arg13: memref<128x128xf32, #tpu.memory_space<vmem>>, %arg14: memref<2x!tpu.dma_semaphore, #tpu.memory_space<semaphore_mem>>) attributes {dimension_semantics = [#tpu.dimension_semantics<parallel>], iteration_bounds = array<i64: 1>, scalar_prefetch = 0 : i64, scratch_operands = 3 : i64, tpu.core_type = #tpu.core_type<tc>, window_params = [{transform_indices = @transform_0, window_bounds = array<i64: 16, 128>}, {transform_indices = @transform_1, window_bounds = array<i64: 16, 128>}, {pipeline_mode = #tpu.pipeline_mode<synchronous>, transform_indices = @transform_2, window_bounds = array<i64: 128, 128>}, {pipeline_mode = #tpu.pipeline_mode<synchronous>, transform_indices = @transform_3, window_bounds = array<i64: 1, 128>}, {pipeline_mode = #tpu.pipeline_mode<synchronous>, transform_indices = @transform_4, window_bounds = array<i64: 128, 256>}, {pipeline_mode = #tpu.pipeline_mode<synchronous>, transform_indices = @transform_5, window_bounds = array<i64: 1, 256>}, {pipeline_mode = #tpu.pipeline_mode<synchronous>, transform_indices = @transform_6, window_bounds = array<i64: 1, 128>}, {pipeline_mode = #tpu.pipeline_mode<synchronous>, transform_indices = @transform_7, window_bounds = array<i64: 1, 128>}, {}, {}, {transform_indices = @transform_10, window_bounds = array<i64: 16, 384>}]} {
    %c0_i32 = arith.constant 0 : i32
    %0 = tpu.memref_slice %arg14[%c0_i32] : memref<2x!tpu.dma_semaphore, #tpu.memory_space<semaphore_mem>> -> memref<1x!tpu.dma_semaphore, #tpu.memory_space<semaphore_mem>>
    %1 = tpu.memref_squeeze %0 : memref<1x!tpu.dma_semaphore, #tpu.memory_space<semaphore_mem>> -> memref<!tpu.dma_semaphore, #tpu.memory_space<semaphore_mem>>
    tpu.enqueue_dma source(%arg9 : memref<128x128xf32, #tpu.memory_space<any>>) target(%arg12 : memref<128x128xf32, #tpu.memory_space<vmem>>) target_semaphore(%1 : memref<!tpu.dma_semaphore, #tpu.memory_space<semaphore_mem>>)
    %c1_i32 = arith.constant 1 : i32
    %2 = tpu.memref_slice %arg14[%c1_i32] : memref<2x!tpu.dma_semaphore, #tpu.memory_space<semaphore_mem>> -> memref<1x!tpu.dma_semaphore, #tpu.memory_space<semaphore_mem>>
    %3 = tpu.memref_squeeze %2 : memref<1x!tpu.dma_semaphore, #tpu.memory_space<semaphore_mem>> -> memref<!tpu.dma_semaphore, #tpu.memory_space<semaphore_mem>>
    tpu.enqueue_dma source(%arg10 : memref<128x128xf32, #tpu.memory_space<any>>) target(%arg13 : memref<128x128xf32, #tpu.memory_space<vmem>>) target_semaphore(%3 : memref<!tpu.dma_semaphore, #tpu.memory_space<semaphore_mem>>)
    %c0 = arith.constant 0 : index
    %c0_0 = arith.constant 0 : index
    %4 = vector.load %arg1[%c0, %c0_0] : memref<16x128xf32, #tpu.memory_space<vmem>>, vector<16x128xf32>
    %c0_1 = arith.constant 0 : index
    %c0_2 = arith.constant 0 : index
    %5 = vector.load %arg3[%c0_1, %c0_2] : memref<128x128xf32, #tpu.memory_space<vmem>>, vector<128x128xf32>
    %cst = arith.constant dense<0.000000e+00> : vector<16x128xf32>
    %6 = tpu.matmul %4, %5, %cst {dimension_numbers = #tpu.dot_dimension_numbers<[1], [0], [0], [1], [0, 0, 1, 1], [], []>} : vector<16x128xf32>, vector<128x128xf32>, vector<16x128xf32> -> vector<16x128xf32>
    %c0_3 = arith.constant 0 : index
    %c0_4 = arith.constant 0 : index
    %7 = vector.load %arg4[%c0_3, %c0_4] : memref<1x128xf32, #tpu.memory_space<vmem>>, vector<1x128xf32>
    %8 = vector.broadcast %7 : vector<1x128xf32> to vector<16x128xf32>
    %9 = arith.addf %6, %8 : vector<16x128xf32>
    %cst_5 = arith.constant 0.000000e+00 : f32
    %10 = vector.broadcast %cst_5 : f32 to vector<16x128xf32>
    %11 = arith.subf %10, %9 : vector<16x128xf32>
    %12 = math.exp %11 : vector<16x128xf32>
    %cst_6 = arith.constant 1.000000e+00 : f32
    %13 = vector.broadcast %cst_6 : f32 to vector<16x128xf32>
    %14 = arith.addf %13, %12 : vector<16x128xf32>
    %15 = tpu.reciprocal %14 : vector<16x128xf32> -> vector<16x128xf32>
    %c0_7 = arith.constant 0 : index
    %c0_8 = arith.constant 0 : index
    %16 = vector.load %arg5[%c0_7, %c0_8] : memref<128x256xf32, #tpu.memory_space<vmem>>, vector<128x256xf32>
    %cst_9 = arith.constant dense<0.000000e+00> : vector<16x256xf32>
    %17 = tpu.matmul %15, %16, %cst_9 {dimension_numbers = #tpu.dot_dimension_numbers<[1], [0], [0], [1], [0, 0, 1, 1], [], []>} : vector<16x128xf32>, vector<128x256xf32>, vector<16x256xf32> -> vector<16x256xf32>
    %c0_10 = arith.constant 0 : index
    %c0_11 = arith.constant 0 : index
    %18 = vector.load %arg6[%c0_10, %c0_11] : memref<1x256xf32, #tpu.memory_space<vmem>>, vector<1x256xf32>
    %19 = vector.broadcast %18 : vector<1x256xf32> to vector<16x256xf32>
    %20 = arith.addf %17, %19 : vector<16x256xf32>
    %21 = vector.extract_strided_slice %20 {offsets = [0, 0], sizes = [16, 128], strides = [1, 1]} : vector<16x256xf32> to vector<16x128xf32>
    %22 = vector.extract_strided_slice %20 {offsets = [0, 128], sizes = [16, 128], strides = [1, 1]} : vector<16x256xf32> to vector<16x128xf32>
    %23 = math.exp %22 : vector<16x128xf32>
    %cst_12 = arith.constant 9.99999974E-6 : f32
    %24 = vector.broadcast %cst_12 : f32 to vector<16x128xf32>
    %25 = arith.addf %23, %24 : vector<16x128xf32>
    %26 = math.sqrt %25 : vector<16x128xf32>
    %c0_13 = arith.constant 0 : index
    %c0_14 = arith.constant 0 : index
    %27 = vector.load %arg2[%c0_13, %c0_14] : memref<16x128xf32, #tpu.memory_space<vmem>>, vector<16x128xf32>
    %28 = arith.mulf %27, %26 : vector<16x128xf32>
    %29 = arith.addf %28, %21 : vector<16x128xf32>
    %c0_i32_15 = arith.constant 0 : i32
    %30 = tpu.memref_slice %arg14[%c0_i32_15] : memref<2x!tpu.dma_semaphore, #tpu.memory_space<semaphore_mem>> -> memref<1x!tpu.dma_semaphore, #tpu.memory_space<semaphore_mem>>
    %31 = tpu.memref_squeeze %30 : memref<1x!tpu.dma_semaphore, #tpu.memory_space<semaphore_mem>> -> memref<!tpu.dma_semaphore, #tpu.memory_space<semaphore_mem>>
    tpu.wait_dma2 semaphore(%31 : memref<!tpu.dma_semaphore, #tpu.memory_space<semaphore_mem>>) src(%arg9 : memref<128x128xf32, #tpu.memory_space<any>>) dst(%arg12 : memref<128x128xf32, #tpu.memory_space<vmem>>)
    %c0_16 = arith.constant 0 : index
    %c0_17 = arith.constant 0 : index
    %32 = vector.load %arg12[%c0_16, %c0_17] : memref<128x128xf32, #tpu.memory_space<vmem>>, vector<128x128xf32>
    %cst_18 = arith.constant dense<0.000000e+00> : vector<16x128xf32>
    %33 = tpu.matmul %29, %32, %cst_18 {dimension_numbers = #tpu.dot_dimension_numbers<[1], [0], [0], [1], [0, 0, 1, 1], [], []>} : vector<16x128xf32>, vector<128x128xf32>, vector<16x128xf32> -> vector<16x128xf32>
    %c0_19 = arith.constant 0 : index
    %c0_20 = arith.constant 0 : index
    %34 = vector.load %arg7[%c0_19, %c0_20] : memref<1x128xf32, #tpu.memory_space<vmem>>, vector<1x128xf32>
    %35 = vector.broadcast %34 : vector<1x128xf32> to vector<16x128xf32>
    %36 = arith.addf %33, %35 : vector<16x128xf32>
    %cst_21 = arith.constant 0.000000e+00 : f32
    %37 = vector.broadcast %cst_21 : f32 to vector<16x128xf32>
    %38 = arith.subf %37, %36 : vector<16x128xf32>
    %39 = math.exp %38 : vector<16x128xf32>
    %cst_22 = arith.constant 1.000000e+00 : f32
    %40 = vector.broadcast %cst_22 : f32 to vector<16x128xf32>
    %41 = arith.addf %40, %39 : vector<16x128xf32>
    %42 = tpu.reciprocal %41 : vector<16x128xf32> -> vector<16x128xf32>
    %c1_i32_23 = arith.constant 1 : i32
    %43 = tpu.memref_slice %arg14[%c1_i32_23] : memref<2x!tpu.dma_semaphore, #tpu.memory_space<semaphore_mem>> -> memref<1x!tpu.dma_semaphore, #tpu.memory_space<semaphore_mem>>
    %44 = tpu.memref_squeeze %43 : memref<1x!tpu.dma_semaphore, #tpu.memory_space<semaphore_mem>> -> memref<!tpu.dma_semaphore, #tpu.memory_space<semaphore_mem>>
    tpu.wait_dma2 semaphore(%44 : memref<!tpu.dma_semaphore, #tpu.memory_space<semaphore_mem>>) src(%arg10 : memref<128x128xf32, #tpu.memory_space<any>>) dst(%arg13 : memref<128x128xf32, #tpu.memory_space<vmem>>)
    %c0_24 = arith.constant 0 : index
    %c0_25 = arith.constant 0 : index
    %45 = vector.load %arg13[%c0_24, %c0_25] : memref<128x128xf32, #tpu.memory_space<vmem>>, vector<128x128xf32>
    %cst_26 = arith.constant dense<0.000000e+00> : vector<16x128xf32>
    %46 = tpu.matmul %42, %45, %cst_26 {dimension_numbers = #tpu.dot_dimension_numbers<[1], [0], [0], [1], [0, 0, 1, 1], [], []>} : vector<16x128xf32>, vector<128x128xf32>, vector<16x128xf32> -> vector<16x128xf32>
    %c0_27 = arith.constant 0 : index
    %c0_28 = arith.constant 0 : index
    %47 = vector.load %arg8[%c0_27, %c0_28] : memref<1x128xf32, #tpu.memory_space<vmem>>, vector<1x128xf32>
    %48 = vector.broadcast %47 : vector<1x128xf32> to vector<16x128xf32>
    %49 = arith.addf %46, %48 : vector<16x128xf32>
    %cst_29 = arith.constant 0.000000e+00 : f32
    %50 = vector.broadcast %cst_29 : f32 to vector<16x128xf32>
    %51 = arith.subf %50, %49 : vector<16x128xf32>
    %52 = math.exp %51 : vector<16x128xf32>
    %cst_30 = arith.constant 1.000000e+00 : f32
    %53 = vector.broadcast %cst_30 : f32 to vector<16x128xf32>
    %54 = arith.addf %53, %52 : vector<16x128xf32>
    %55 = tpu.reciprocal %54 : vector<16x128xf32> -> vector<16x128xf32>
    %c0_31 = arith.constant 0 : index
    %c0_32 = arith.constant 0 : index
    %56 = vector.load %arg11[%c0_31, %c0_32] : memref<16x384xf32, #tpu.memory_space<vmem>>, vector<16x128xf32>
    tpu.vector_store %arg11[%c0_31, %c0_32], %55 {strides = array<i32>} : memref<16x384xf32, #tpu.memory_space<vmem>>, vector<16x128xf32>,
    %c0_33 = arith.constant 0 : index
    %c128 = arith.constant 128 : index
    %57 = vector.load %arg11[%c0_33, %c128] : memref<16x384xf32, #tpu.memory_space<vmem>>, vector<16x128xf32>
    tpu.vector_store %arg11[%c0_33, %c128], %21 {strides = array<i32>} : memref<16x384xf32, #tpu.memory_space<vmem>>, vector<16x128xf32>,
    %c0_34 = arith.constant 0 : index
    %c256 = arith.constant 256 : index
    %58 = vector.load %arg11[%c0_34, %c256] : memref<16x384xf32, #tpu.memory_space<vmem>>, vector<16x128xf32>
    tpu.vector_store %arg11[%c0_34, %c256], %25 {strides = array<i32>} : memref<16x384xf32, #tpu.memory_space<vmem>>, vector<16x128xf32>,
    return
  }
  func.func @transform_0(%arg0: i32) -> (i32, i32) {
    %c0_i32 = arith.constant 0 : i32
    %c0_i32_0 = arith.constant 0 : i32
    return %arg0, %c0_i32 : i32, i32
  }
  func.func @transform_1(%arg0: i32) -> (i32, i32) {
    %c0_i32 = arith.constant 0 : i32
    %c0_i32_0 = arith.constant 0 : i32
    return %arg0, %c0_i32 : i32, i32
  }
  func.func @transform_2(%arg0: i32) -> (i32, i32) {
    %c0_i32 = arith.constant 0 : i32
    %c0_i32_0 = arith.constant 0 : i32
    %c0_i32_1 = arith.constant 0 : i32
    return %c0_i32, %c0_i32_0 : i32, i32
  }
  func.func @transform_3(%arg0: i32) -> (i32, i32) {
    %c0_i32 = arith.constant 0 : i32
    %c0_i32_0 = arith.constant 0 : i32
    %c0_i32_1 = arith.constant 0 : i32
    return %c0_i32, %c0_i32_0 : i32, i32
  }
  func.func @transform_4(%arg0: i32) -> (i32, i32) {
    %c0_i32 = arith.constant 0 : i32
    %c0_i32_0 = arith.constant 0 : i32
    %c0_i32_1 = arith.constant 0 : i32
    return %c0_i32, %c0_i32_0 : i32, i32
  }
  func.func @transform_5(%arg0: i32) -> (i32, i32) {
    %c0_i32 = arith.constant 0 : i32
    %c0_i32_0 = arith.constant 0 : i32
    %c0_i32_1 = arith.constant 0 : i32
    return %c0_i32, %c0_i32_0 : i32, i32
  }
  func.func @transform_6(%arg0: i32) -> (i32, i32) {
    %c0_i32 = arith.constant 0 : i32
    %c0_i32_0 = arith.constant 0 : i32
    %c0_i32_1 = arith.constant 0 : i32
    return %c0_i32, %c0_i32_0 : i32, i32
  }
  func.func @transform_7(%arg0: i32) -> (i32, i32) {
    %c0_i32 = arith.constant 0 : i32
    %c0_i32_0 = arith.constant 0 : i32
    %c0_i32_1 = arith.constant 0 : i32
    return %c0_i32, %c0_i32_0 : i32, i32
  }
  func.func @transform_10(%arg0: i32) -> (i32, i32) {
    %c0_i32 = arith.constant 0 : i32
    %c0_i32_0 = arith.constant 0 : i32
    return %arg0, %c0_i32 : i32, i32
  }
}

</mosaic_0001>

<llo_original>
// kernel: vae_forward.1
$region0: #{vae_forward.1}
  #allocation0 [shape = 'u32[]', space=smem, size = 0x4, offset = 0x4, fixed_abs, tag = 'smem constant byte address 0x4 - core index']
  #allocation1 [shape = 'u32[144,128]{1,0:T(1,128)}', space=vmem, size = 0x12000, scoped, tag = 'internal scratch']
  #allocation2 [shape = 'f32[128,128]{1,0:T(8,128)}', space=vmem, size = 0x10000, scoped, tag = 'scratch operand']
  #allocation3 [shape = 'f32[128,128]{1,0:T(8,128)}', space=vmem, size = 0x10000, scoped, tag = 'scratch operand']
  #allocation4 [shape = 's32[2]{0}', space=sflag, size = 0x8, scoped, tag = 'scratch operand']
  #allocation9 [shape = 's32[]', space=sflag, size = 0x4, offset = 0, fixed_abs, tag = 'sflag constant byte address 0x0 - dummy sync flag']
  #allocation10 [shape = 's32[]', space=sflag, size = 0x4, offset = 0, fixed_abs, tag = 'sflag constant byte address 0x0 - dummy sync flag']
  #allocation11 [shape = 'u32[]', space=smem, size = 0x4, offset = 0x44, fixed_abs, tag = 'smem constant byte address 0x44 - assertion arg 0']
  #allocation12 [shape = 'u32[]', space=smem, size = 0x4, offset = 0x48, fixed_abs, tag = 'smem constant byte address 0x48 - assertion arg 1']
  #allocation13 [shape = 's32[]', space=sflag, size = 0x4, offset = 0, fixed_abs, tag = 'sflag constant byte address 0x0 - dummy sync flag']
  #allocation14 [shape = 's32[]', space=sflag, size = 0x4, offset = 0, fixed_abs, tag = 'sflag constant byte address 0x0 - dummy sync flag']
  %s0 = inlined_call_operand.vmem [shape: f32[16,128], index: 0, kind: input, shape index: {}]
  %s1 = inlined_call_operand.vmem [shape: f32[16,128], index: 1, kind: input, shape index: {}]
  %s2 = inlined_call_operand.hbm [shape: f32[128,128], index: 2, kind: input, shape index: {}]
  %s3 = inlined_call_operand.vmem [shape: f32[1,128], index: 3, kind: input, shape index: {}]
  %s4 = inlined_call_operand.hbm [shape: f32[128,256], index: 4, kind: input, shape index: {}]
  %s5 = inlined_call_operand.vmem [shape: f32[1,256], index: 5, kind: input, shape index: {}]
  %s6 = inlined_call_operand.vmem [shape: f32[1,128], index: 6, kind: input, shape index: {}]
  %s7 = inlined_call_operand.vmem [shape: f32[1,128], index: 7, kind: input, shape index: {}]
  %s8 = inlined_call_operand.hbm [shape: f32[128,128], index: 8, kind: input, shape index: {}]
  %s9 = inlined_call_operand.hbm [shape: f32[128,128], index: 9, kind: input, shape index: {}]
  %s10 = inlined_call_operand.vmem [shape: f32[16,384], index: 10, kind: output, shape index: {}]
  %s11 = sld [smem:[#allocation0]]
  $region58: #{vae_forward.1} parent=0
    _
  %s13 = ssub.s32 1, %s11
  %s14 = scalar_select 0, %s13, %s11
  $region1: #{vae_forward.1} parent=0
    #allocation5 [shape = 'u8[65536]{0}', space=vmem, size = 0x10000, scoped, tag = 'input window, operand 2, single buffered']
    #allocation6 [shape = 's32[1]{0}', space=sflag, size = 0x4, scoped, tag = 'scoped memory for vae_forward.1']
    #allocation7 [shape = 'u8[131072]{0}', space=vmem, size = 0x20000, scoped, tag = 'input window, operand 4, single buffered']
    #allocation8 [shape = 's32[1]{0}', space=sflag, size = 0x4, scoped, tag = 'scoped memory for vae_forward.1']
    %15 = vsyncpa [#allocation6], 0
    %16 = vsyncpa [#allocation8], 0
    // Predicated region
    $region2: #{vae_forward.1} parent=1 // pred_check
      _
    $region3: #{vae_forward.1} parent=1 // pred_check_branch
      %18 = sbr.rel (0) target = $region5
    $region4: #{vae_forward.1} parent=1 // pred_region
      _
    $region5: #{vae_forward.1} parent=1 // pred_fallthru
      _
    // Predicated region
    $region6: #{vae_forward.1} parent=1 // pred_check
      _
    $region7: #{vae_forward.1} parent=1 // pred_check_branch
      %20 = sbr.rel (0) target = $region9
    $region8: #{vae_forward.1} parent=1 // pred_region
      _
    $region9: #{vae_forward.1} parent=1 // pred_fallthru
      _
    // Predicated region
    $region10: #{vae_forward.1} parent=1 // pred_check
      _
    $region11: #{vae_forward.1} parent=1 // pred_check_branch
      %22 = sbr.rel (0) target = $region13
    $region12: #{vae_forward.1} parent=1 // pred_region
      %s24 = ssub.s32 2048, 2048
      %25 = vsyncadd [#allocation6], %s24
      %s26 = sshll.u32 [#allocation5], 4
      %s27 = int_to_ptr.vmem [resolvable:$true] %s26
      %32 = dma.hbm_to_vmem [thread:$0]  %s2, 2048, %s27, [#allocation6], 128, 128, 8
    $region13: #{vae_forward.1} parent=1 // pred_fallthru
      _
    // Predicated region
    $region14: #{vae_forward.1} parent=1 // pred_check
      _
    $region15: #{vae_forward.1} parent=1 // pred_check_branch
      %34 = sbr.rel (0) target = $region17
    $region16: #{vae_forward.1} parent=1 // pred_region
      _
    $region17: #{vae_forward.1} parent=1 // pred_fallthru
      _
    // Predicated region
    $region18: #{vae_forward.1} parent=1 // pred_check
      _
    $region19: #{vae_forward.1} parent=1 // pred_check_branch
      %36 = sbr.rel (0) target = $region21
    $region20: #{vae_forward.1} parent=1 // pred_region
      %s38 = ssub.s32 4096, 4096
      %39 = vsyncadd [#allocation8], %s38
      %s40 = sshll.u32 [#allocation7], 4
      %s41 = int_to_ptr.vmem [resolvable:$true] %s40
      %46 = dma.hbm_to_vmem [thread:$0]  %s4, 4096, %s41, [#allocation8], 256, 256, 16
    $region21: #{vae_forward.1} parent=1 // pred_fallthru
      _
    // Predicated region
    $region22: #{vae_forward.1} parent=1 // pred_check
      _
    $region23: #{vae_forward.1} parent=1 // pred_check_branch
      %48 = sbr.rel (0) target = $region25
    $region24: #{vae_forward.1} parent=1 // pred_region
      _
    $region25: #{vae_forward.1} parent=1 // pred_fallthru
      _
    // Predicated region
    $region26: #{vae_forward.1} parent=1 // pred_check
      _
    $region27: #{vae_forward.1} parent=1 // pred_check_branch
      %50 = sbr.rel (0) target = $region29
    $region28: #{vae_forward.1} parent=1 // pred_region
      _
    $region29: #{vae_forward.1} parent=1 // pred_fallthru
      _
    // Predicated region
    $region30: #{vae_forward.1} parent=1 // pred_check
      _
    $region31: #{vae_forward.1} parent=1 // pred_check_branch
      %52 = sbr.rel (0) target = $region33
    $region32: #{vae_forward.1} parent=1 // pred_region
      _
    $region33: #{vae_forward.1} parent=1 // pred_fallthru
      _
    // Predicated region
    $region34: #{vae_forward.1} parent=1 // pred_check
      _
    $region35: #{vae_forward.1} parent=1 // pred_check_branch
      %54 = sbr.rel (0) target = $region37
    $region36: #{vae_forward.1} parent=1 // pred_region
      %55 = dma.done [#allocation6], 2048
    $region37: #{vae_forward.1} parent=1 // pred_fallthru
      _
    // Predicated region
    $region38: #{vae_forward.1} parent=1 // pred_check
      _
    $region39: #{vae_forward.1} parent=1 // pred_check_branch
      %57 = sbr.rel (0) target = $region41
    $region40: #{vae_forward.1} parent=1 // pred_region
      %58 = dma.done [#allocation8], 4096
    $region41: #{vae_forward.1} parent=1 // pred_fallthru
      _
    // Predicated region
    $region42: #{vae_forward.1} parent=1 // pred_check
      _
    $region43: #{vae_forward.1} parent=1 // pred_check_branch
      %60 = sbr.rel target = $region45
    $region44: #{vae_forward.1} parent=1 // pred_region
      %61 = sst [smem:[#allocation11]] [#allocation10]
      %62 = sst [smem:[#allocation12]] [#allocation9]
    $region45: #{vae_forward.1} parent=1 // pred_fallthru
      _
    %64 = shalt.err (0)
    %s66 = sshll.u32 [#allocation2], 4
    %s67 = int_to_ptr.vmem [resolvable:$true] %s66
    %69 = dma.hbm_to_vmem [thread:$0]  %s8, 2048, %s67, [#allocation4]
    %s70 = scalar_lea.sflag [#allocation4], 1
    // Predicated region
    $region46: #{vae_forward.1} parent=1 // pred_check
      _
    $region47: #{vae_forward.1} parent=1 // pred_check_branch
      %72 = sbr.rel target = $region49
    $region48: #{vae_forward.1} parent=1 // pred_region
      %73 = sst [smem:[#allocation11]] [#allocation14]
      %74 = sst [smem:[#allocation12]] [#allocation13]
    $region49: #{vae_forward.1} parent=1 // pred_fallthru
      _
    %76 = shalt.err (0)
    %s78 = sshll.u32 [#allocation3], 4
    %s79 = int_to_ptr.vmem [resolvable:$true] %s78
    %81 = dma.hbm_to_vmem [thread:$0]  %s9, 2048, %s79, %s70
    %v82 = vld [vmem:[%s0] sm:$0xff]
    %v83 = vld [vmem:[%s0 + $0x8] sm:$0xff]
    %v84 = vld [vmem:[#allocation5] sm:$0xff]
    %v85 = vld [vmem:[#allocation5 + $0x8] sm:$0xff]
    %v86 = vld [vmem:[#allocation5 + $0x10] sm:$0xff]
    %v87 = vld [vmem:[#allocation5 + $0x18] sm:$0xff]
    %v88 = vld [vmem:[#allocation5 + $0x20] sm:$0xff]
    %v89 = vld [vmem:[#allocation5 + $0x28] sm:$0xff]
    %v90 = vld [vmem:[#allocation5 + $0x30] sm:$0xff]
    %v91 = vld [vmem:[#allocation5 + $0x38] sm:$0xff]
    %v92 = vld [vmem:[#allocation5 + $0x40] sm:$0xff]
    %v93 = vld [vmem:[#allocation5 + $0x48] sm:$0xff]
    %v94 = vld [vmem:[#allocation5 + $0x50] sm:$0xff]
    %v95 = vld [vmem:[#allocation5 + $0x58] sm:$0xff]
    %v96 = vld [vmem:[#allocation5 + $0x60] sm:$0xff]
    %v97 = vld [vmem:[#allocation5 + $0x68] sm:$0xff]
    %v98 = vld [vmem:[#allocation5 + $0x70] sm:$0xff]
    %v99 = vld [vmem:[#allocation5 + $0x78] sm:$0xff]
    %v100 = vld [vmem:[%s3] sm:$0x1]
    %v102 = vlaneseq
    %v103 = vshrl.u32 %v102, 7
    %v104 = vsub.s32 0, %v103
    %v105 = vrot.slane %v100, %v104
    %107 = vmatprep.subr.mxu0 0.0
    %108 = vmatpush1.msra.mxu0 %v84
    %109 = vmatprep.subr.mxu0 0.0
    %110 = vmatpush1.msra.mxu0 %v85
    %111 = vmatprep.subr.mxu0 0.0
    %112 = vmatpush1.msra.mxu0 %v86
    %113 = vmatprep.subr.mxu0 0.0
    %114 = vmatpush1.msra.mxu0 %v87
    %115 = vmatprep.subr.mxu0 0.0
    %116 = vmatpush1.msra.mxu0 %v88
    %117 = vmatprep.subr.mxu0 0.0
    %118 = vmatpush1.msra.mxu0 %v89
    %119 = vmatprep.subr.mxu0 0.0
    %120 = vmatpush1.msra.mxu0 %v90
    %121 = vmatprep.subr.mxu0 0.0
    %122 = vmatpush1.msra.mxu0 %v91
    %123 = vmatprep.subr.mxu0 0.0
    %124 = vmatpush1.msra.mxu0 %v92
    %125 = vmatprep.subr.mxu0 0.0
    %126 = vmatpush1.msra.mxu0 %v93
    %127 = vmatprep.subr.mxu0 0.0
    %128 = vmatpush1.msra.mxu0 %v94
    %129 = vmatprep.subr.mxu0 0.0
    %130 = vmatpush1.msra.mxu0 %v95
    %131 = vmatprep.subr.mxu0 0.0
    %132 = vmatpush1.msra.mxu0 %v96
    %133 = vmatprep.subr.mxu0 0.0
    %134 = vmatpush1.msra.mxu0 %v97
    %135 = vmatprep.subr.mxu0 0.0
    %136 = vmatpush1.msra.mxu0 %v98
    %137 = vmatprep.subr.mxu0 0.0
    %138 = vmatpush1.msra.mxu0 %v99
    %139 = vmatprep.subr.mxu0 0.0
    %140 = vmatpush1.msra.mxu0 0.0
    %141 = vmatprep.subr.mxu0 0.0
    %142 = vmatpush1.msra.mxu0 0.0
    %143 = vmatprep.subr.mxu0 0.0
    %144 = vmatpush1.msra.mxu0 0.0
    %145 = vmatprep.subr.mxu0 0.0
    %146 = vmatpush1.msra.mxu0 0.0
    %147 = vmatprep.subr.mxu0 0.0
    %148 = vmatpush1.msra.mxu0 0.0
    %149 = vmatprep.subr.mxu0 0.0
    %150 = vmatpush1.msra.mxu0 0.0
    %151 = vmatprep.subr.mxu0 0.0
    %152 = vmatpush1.msra.mxu0 0.0
    %153 = vmatprep.subr.mxu0 0.0
    %154 = vmatpush1.msra.mxu0 0.0
    %155 = vmatprep.subr.mxu0 0.0
    %156 = vmatpush1.msra.mxu0 0.0
    %157 = vmatprep.subr.mxu0 0.0
    %158 = vmatpush1.msra.mxu0 0.0
    %159 = vmatprep.subr.mxu0 0.0
    %160 = vmatpush1.msra.mxu0 0.0
    %161 = vmatprep.subr.mxu0 0.0
    %162 = vmatpush1.msra.mxu0 0.0
    %163 = vmatprep.subr.mxu0 0.0
    %164 = vmatpush1.msra.mxu0 0.0
    %165 = vmatprep.subr.mxu0 0.0
    %166 = vmatpush1.msra.mxu0 0.0
    %167 = vmatprep.subr.mxu0 0.0
    %168 = vmatpush1.msra.mxu0 0.0
    %169 = vmatprep.subr.mxu0 0.0
    %170 = vmatpush1.msra.mxu0 0.0
    %171 = vmatprep.mubr.f32.mxu0 0.0
    %172 = vmatmul.mubr.f32.gmra.mrb[0].mxu0 %v82
    %v173 = vpop.f32.mrb[0].mxu0
    %v174 = vadd.f32 %v105, %v173
    %v175 = vpop.f32.mrb[0].mxu0
    %176 = vmatprep.mubr.f32.mxu0 0.0
    %177 = vmatmul.mubr.f32.gmra.mrb[0].mxu0 %v83
    %v178 = vpop.f32.mrb[0].mxu0
    %v179 = vadd.f32 %v105, %v178
    %v180 = vpop.f32.mrb[0].mxu0
    %181 = vdwg.mxu0
    %v182 = vsub.f32 0.0, %v174
    %v183 = vsub.f32 0.0, %v179
    %v184 = vmul.f32 %v182, 1.442695
    %v185 = vpow.pop %v184
    %v186 = vmul.f32 %v183, 1.442695
    %v187 = vpow.pop %v186
    %v188 = vadd.f32 %v185, 1.0
    %v189 = vadd.f32 %v187, 1.0
    %v190 = vrcp.pop %v188
    %v191 = vrcp.pop %v189
    %v192 = vld [vmem:[#allocation7] sm:$0xff]
    %v193 = vld [vmem:[#allocation7 + $0x8] sm:$0xff]
    %v194 = vld [vmem:[#allocation7 + $0x10] sm:$0xff]
    %v195 = vld [vmem:[#allocation7 + $0x18] sm:$0xff]
    %v196 = vld [vmem:[#allocation7 + $0x20] sm:$0xff]
    %v197 = vld [vmem:[#allocation7 + $0x28] sm:$0xff]
    %v198 = vld [vmem:[#allocation7 + $0x30] sm:$0xff]
    %v199 = vld [vmem:[#allocation7 + $0x38] sm:$0xff]
    %v200 = vld [vmem:[#allocation7 + $0x40] sm:$0xff]
    %v201 = vld [vmem:[#allocation7 + $0x48] sm:$0xff]
    %v202 = vld [vmem:[#allocation7 + $0x50] sm:$0xff]
    %v203 = vld [vmem:[#allocation7 + $0x58] sm:$0xff]
    %v204 = vld [vmem:[#allocation7 + $0x60] sm:$0xff]
    %v205 = vld [vmem:[#allocation7 + $0x68] sm:$0xff]
    %v206 = vld [vmem:[#allocation7 + $0x70] sm:$0xff]
    %v207 = vld [vmem:[#allocation7 + $0x78] sm:$0xff]
    %v208 = vld [vmem:[#allocation7 + $0x80] sm:$0xff]
    %v209 = vld [vmem:[#allocation7 + $0x88] sm:$0xff]
    %v210 = vld [vmem:[#allocation7 + $0x90] sm:$0xff]
    %v211 = vld [vmem:[#allocation7 + $0x98] sm:$0xff]
    %v212 = vld [vmem:[#allocation7 + $0xa0] sm:$0xff]
    %v213 = vld [vmem:[#allocation7 + $0xa8] sm:$0xff]
    %v214 = vld [vmem:[#allocation7 + $0xb0] sm:$0xff]
    %v215 = vld [vmem:[#allocation7 + $0xb8] sm:$0xff]
    %v216 = vld [vmem:[#allocation7 + $0xc0] sm:$0xff]
    %v217 = vld [vmem:[#allocation7 + $0xc8] sm:$0xff]
    %v218 = vld [vmem:[#allocation7 + $0xd0] sm:$0xff]
    %v219 = vld [vmem:[#allocation7 + $0xd8] sm:$0xff]
    %v220 = vld [vmem:[#allocation7 + $0xe0] sm:$0xff]
    %v221 = vld [vmem:[#allocation7 + $0xe8] sm:$0xff]
    %v222 = vld [vmem:[#allocation7 + $0xf0] sm:$0xff]
    %v223 = vld [vmem:[#allocation7 + $0xf8] sm:$0xff]
    %v224 = vld [vmem:[%s5] sm:$0x3]
    %v226 = vlaneseq
    %v227 = vshrl.u32 %v226, 7
    %v228 = vsub.s32 0, %v227
    %v229 = vrot.slane %v224, %v228
    %v230 = vlaneseq
    %v231 = vshrl.u32 %v230, 7
    %v232 = vsub.s32 1, %v231
    %v233 = vrot.slane %v224, %v232
    %236 = vmatprep.subr.mxu0 %v193
    %237 = vmatpush1.msra.mxu0 %v192
    %238 = vmatprep.subr.mxu0 %v195
    %239 = vmatpush1.msra.mxu0 %v194
    %240 = vmatprep.subr.mxu0 %v197
    %241 = vmatpush1.msra.mxu0 %v196
    %242 = vmatprep.subr.mxu0 %v199
    %243 = vmatpush1.msra.mxu0 %v198
    %244 = vmatprep.subr.mxu0 %v201
    %245 = vmatpush1.msra.mxu0 %v200
    %246 = vmatprep.subr.mxu0 %v203
    %247 = vmatpush1.msra.mxu0 %v202
    %248 = vmatprep.subr.mxu0 %v205
    %249 = vmatpush1.msra.mxu0 %v204
    %250 = vmatprep.subr.mxu0 %v207
    %251 = vmatpush1.msra.mxu0 %v206
    %252 = vmatprep.subr.mxu0 %v209
    %253 = vmatpush1.msra.mxu0 %v208
    %254 = vmatprep.subr.mxu0 %v211
    %255 = vmatpush1.msra.mxu0 %v210
    %256 = vmatprep.subr.mxu0 %v213
    %257 = vmatpush1.msra.mxu0 %v212
    %258 = vmatprep.subr.mxu0 %v215
    %259 = vmatpush1.msra.mxu0 %v214
    %260 = vmatprep.subr.mxu0 %v217
    %261 = vmatpush1.msra.mxu0 %v216
    %262 = vmatprep.subr.mxu0 %v219
    %263 = vmatpush1.msra.mxu0 %v218
    %264 = vmatprep.subr.mxu0 %v221
    %265 = vmatpush1.msra.mxu0 %v220
    %266 = vmatprep.subr.mxu0 %v223
    %267 = vmatpush1.msra.mxu0 %v222
    %268 = vmatprep.subr.mxu0 0.0
    %269 = vmatpush1.msra.mxu0 0.0
    %270 = vmatprep.subr.mxu0 0.0
    %271 = vmatpush1.msra.mxu0 0.0
    %272 = vmatprep.subr.mxu0 0.0
    %273 = vmatpush1.msra.mxu0 0.0
    %274 = vmatprep.subr.mxu0 0.0
    %275 = vmatpush1.msra.mxu0 0.0
    %276 = vmatprep.subr.mxu0 0.0
    %277 = vmatpush1.msra.mxu0 0.0
    %278 = vmatprep.subr.mxu0 0.0
    %279 = vmatpush1.msra.mxu0 0.0
    %280 = vmatprep.subr.mxu0 0.0
    %281 = vmatpush1.msra.mxu0 0.0
    %282 = vmatprep.subr.mxu0 0.0
    %283 = vmatpush1.msra.mxu0 0.0
    %284 = vmatprep.subr.mxu0 0.0
    %285 = vmatpush1.msra.mxu0 0.0
    %286 = vmatprep.subr.mxu0 0.0
    %287 = vmatpush1.msra.mxu0 0.0
    %288 = vmatprep.subr.mxu0 0.0
    %289 = vmatpush1.msra.mxu0 0.0
    %290 = vmatprep.subr.mxu0 0.0
    %291 = vmatpush1.msra.mxu0 0.0
    %292 = vmatprep.subr.mxu0 0.0
    %293 = vmatpush1.msra.mxu0 0.0
    %294 = vmatprep.subr.mxu0 0.0
    %295 = vmatpush1.msra.mxu0 0.0
    %296 = vmatprep.subr.mxu0 0.0
    %297 = vmatpush1.msra.mxu0 0.0
    %298 = vmatprep.subr.mxu0 0.0
    %299 = vmatpush1.msra.mxu0 0.0
    %300 = vmatprep.mubr.f32.mxu0 0.0
    %301 = vmatmul.mubr.f32.gmra.mrb[0].mxu0 %v190
    %v302 = vpop.f32.mrb[0].mxu0
    %v303 = vadd.f32 %v229, %v302
    %v304 = vpop.f32.mrb[0].mxu0
    %v305 = vadd.f32 %v233, %v304
    %306 = vmatprep.mubr.f32.mxu0 0.0
    %307 = vmatmul.mubr.f32.gmra.mrb[0].mxu0 %v191
    %v308 = vpop.f32.mrb[0].mxu0
    %v309 = vadd.f32 %v229, %v308
    %v310 = vpop.f32.mrb[0].mxu0
    %v311 = vadd.f32 %v233, %v310
    %312 = vdwg.mxu0
    %v313 = vmul.f32 %v305, 1.442695
    %v314 = vpow.pop %v313
    %v315 = vmul.f32 %v311, 1.442695
    %v316 = vpow.pop %v315
    %v317 = vadd.f32 %v314, 1e-05
    %v318 = vadd.f32 %v316, 1e-05
    %v319 = vrsqrt.pop %v317
    %v320 = vmul.f32 %v317, %v319
    %vm321 = vcmp.eq.f32.partialorder %v317, inf
    %v322 = vsel %vm321, %v317, %v320
    %vm323 = vcmp.eq.f32.partialorder %v317, 0.0
    %v324 = vand.u32 %v317, 2147483648
    %v325 = vsel %vm323, %v324, %v322
    %v326 = vrsqrt.pop %v318
    %v327 = vmul.f32 %v318, %v326
    %vm328 = vcmp.eq.f32.partialorder %v318, inf
    %v329 = vsel %vm328, %v318, %v327
    %vm330 = vcmp.eq.f32.partialorder %v318, 0.0
    %v331 = vand.u32 %v318, 2147483648
    %v332 = vsel %vm330, %v331, %v329
    %v333 = vld [vmem:[%s1] sm:$0xff]
    %v334 = vld [vmem:[%s1 + $0x8] sm:$0xff]
    %v335 = vmul.f32 %v333, %v325
    %v336 = vmul.f32 %v334, %v332
    %v337 = vadd.f32 %v335, %v303
    %v338 = vadd.f32 %v336, %v309
    %s339 = smul.u32 128, 1
    %s340 = sshll.u32 %s339, 4
    %341 = dma.done [#allocation4], %s340
    %v342 = vld [vmem:[#allocation2] sm:$0xff]
    %v343 = vld [vmem:[#allocation2 + $0x8] sm:$0xff]
    %v344 = vld [vmem:[#allocation2 + $0x10] sm:$0xff]
    %v345 = vld [vmem:[#allocation2 + $0x18] sm:$0xff]
    %v346 = vld [vmem:[#allocation2 + $0x20] sm:$0xff]
    %v347 = vld [vmem:[#allocation2 + $0x28] sm:$0xff]
    %v348 = vld [vmem:[#allocation2 + $0x30] sm:$0xff]
    %v349 = vld [vmem:[#allocation2 + $0x38] sm:$0xff]
    %v350 = vld [vmem:[#allocation2 + $0x40] sm:$0xff]
    %v351 = vld [vmem:[#allocation2 + $0x48] sm:$0xff]
    %v352 = vld [vmem:[#allocation2 + $0x50] sm:$0xff]
    %v353 = vld [vmem:[#allocation2 + $0x58] sm:$0xff]
    %v354 = vld [vmem:[#allocation2 + $0x60] sm:$0xff]
    %v355 = vld [vmem:[#allocation2 + $0x68] sm:$0xff]
    %v356 = vld [vmem:[#allocation2 + $0x70] sm:$0xff]
    %v357 = vld [vmem:[#allocation2 + $0x78] sm:$0xff]
    %v358 = vld [vmem:[%s6] sm:$0x1]
    %v360 = vlaneseq
    %v361 = vshrl.u32 %v360, 7
    %v362 = vsub.s32 0, %v361
    %v363 = vrot.slane %v358, %v362
    %365 = vmatprep.subr.mxu0 0.0
    %366 = vmatpush1.msra.mxu0 %v342
    %367 = vmatprep.subr.mxu0 0.0
    %368 = vmatpush1.msra.mxu0 %v343
    %369 = vmatprep.subr.mxu0 0.0
    %370 = vmatpush1.msra.mxu0 %v344
    %371 = vmatprep.subr.mxu0 0.0
    %372 = vmatpush1.msra.mxu0 %v345
    %373 = vmatprep.subr.mxu0 0.0
    %374 = vmatpush1.msra.mxu0 %v346
    %375 = vmatprep.subr.mxu0 0.0
    %376 = vmatpush1.msra.mxu0 %v347
    %377 = vmatprep.subr.mxu0 0.0
    %378 = vmatpush1.msra.mxu0 %v348
    %379 = vmatprep.subr.mxu0 0.0
    %380 = vmatpush1.msra.mxu0 %v349
    %381 = vmatprep.subr.mxu0 0.0
    %382 = vmatpush1.msra.mxu0 %v350
    %383 = vmatprep.subr.mxu0 0.0
    %384 = vmatpush1.msra.mxu0 %v351
    %385 = vmatprep.subr.mxu0 0.0
    %386 = vmatpush1.msra.mxu0 %v352
    %387 = vmatprep.subr.mxu0 0.0
    %388 = vmatpush1.msra.mxu0 %v353
    %389 = vmatprep.subr.mxu0 0.0
    %390 = vmatpush1.msra.mxu0 %v354
    %391 = vmatprep.subr.mxu0 0.0
    %392 = vmatpush1.msra.mxu0 %v355
    %393 = vmatprep.subr.mxu0 0.0
    %394 = vmatpush1.msra.mxu0 %v356
    %395 = vmatprep.subr.mxu0 0.0
    %396 = vmatpush1.msra.mxu0 %v357
    %397 = vmatprep.subr.mxu0 0.0
    %398 = vmatpush1.msra.mxu0 0.0
    %399 = vmatprep.subr.mxu0 0.0
    %400 = vmatpush1.msra.mxu0 0.0
    %401 = vmatprep.subr.mxu0 0.0
    %402 = vmatpush1.msra.mxu0 0.0
    %403 = vmatprep.subr.mxu0 0.0
    %404 = vmatpush1.msra.mxu0 0.0
    %405 = vmatprep.subr.mxu0 0.0
    %406 = vmatpush1.msra.mxu0 0.0
    %407 = vmatprep.subr.mxu0 0.0
    %408 = vmatpush1.msra.mxu0 0.0
    %409 = vmatprep.subr.mxu0 0.0
    %410 = vmatpush1.msra.mxu0 0.0
    %411 = vmatprep.subr.mxu0 0.0
    %412 = vmatpush1.msra.mxu0 0.0
    %413 = vmatprep.subr.mxu0 0.0
    %414 = vmatpush1.msra.mxu0 0.0
    %415 = vmatprep.subr.mxu0 0.0
    %416 = vmatpush1.msra.mxu0 0.0
    %417 = vmatprep.subr.mxu0 0.0
    %418 = vmatpush1.msra.mxu0 0.0
    %419 = vmatprep.subr.mxu0 0.0
    %420 = vmatpush1.msra.mxu0 0.0
    %421 = vmatprep.subr.mxu0 0.0
    %422 = vmatpush1.msra.mxu0 0.0
    %423 = vmatprep.subr.mxu0 0.0
    %424 = vmatpush1.msra.mxu0 0.0
    %425 = vmatprep.subr.mxu0 0.0
    %426 = vmatpush1.msra.mxu0 0.0
    %427 = vmatprep.subr.mxu0 0.0
    %428 = vmatpush1.msra.mxu0 0.0
    %429 = vmatprep.mubr.f32.mxu0 0.0
    %430 = vmatmul.mubr.f32.gmra.mrb[0].mxu0 %v337
    %v431 = vpop.f32.mrb[0].mxu0
    %v432 = vadd.f32 %v363, %v431
    %v433 = vpop.f32.mrb[0].mxu0
    %434 = vmatprep.mubr.f32.mxu0 0.0
    %435 = vmatmul.mubr.f32.gmra.mrb[0].mxu0 %v338
    %v436 = vpop.f32.mrb[0].mxu0
    %v437 = vadd.f32 %v363, %v436
    %v438 = vpop.f32.mrb[0].mxu0
    %439 = vdwg.mxu0
    %v440 = vsub.f32 0.0, %v432
    %v441 = vsub.f32 0.0, %v437
    %v442 = vmul.f32 %v440, 1.442695
    %v443 = vpow.pop %v442
    %v444 = vmul.f32 %v441, 1.442695
    %v445 = vpow.pop %v444
    %v446 = vadd.f32 %v443, 1.0
    %v447 = vadd.f32 %v445, 1.0
    %v448 = vrcp.pop %v446
    %v449 = vrcp.pop %v447
    %s450 = sshll.u32 %s339, 4
    %451 = dma.done %s70, %s450
    %v452 = vld [vmem:[#allocation3] sm:$0xff]
    %v453 = vld [vmem:[#allocation3 + $0x8] sm:$0xff]
    %v454 = vld [vmem:[#allocation3 + $0x10] sm:$0xff]
    %v455 = vld [vmem:[#allocation3 + $0x18] sm:$0xff]
    %v456 = vld [vmem:[#allocation3 + $0x20] sm:$0xff]
    %v457 = vld [vmem:[#allocation3 + $0x28] sm:$0xff]
    %v458 = vld [vmem:[#allocation3 + $0x30] sm:$0xff]
    %v459 = vld [vmem:[#allocation3 + $0x38] sm:$0xff]
    %v460 = vld [vmem:[#allocation3 + $0x40] sm:$0xff]
    %v461 = vld [vmem:[#allocation3 + $0x48] sm:$0xff]
    %v462 = vld [vmem:[#allocation3 + $0x50] sm:$0xff]
    %v463 = vld [vmem:[#allocation3 + $0x58] sm:$0xff]
    %v464 = vld [vmem:[#allocation3 + $0x60] sm:$0xff]
    %v465 = vld [vmem:[#allocation3 + $0x68] sm:$0xff]
    %v466 = vld [vmem:[#allocation3 + $0x70] sm:$0xff]
    %v467 = vld [vmem:[#allocation3 + $0x78] sm:$0xff]
    %v468 = vld [vmem:[%s7] sm:$0x1]
    %v470 = vlaneseq
    %v471 = vshrl.u32 %v470, 7
    %v472 = vsub.s32 0, %v471
    %v473 = vrot.slane %v468, %v472
    %475 = vmatprep.subr.mxu0 0.0
    %476 = vmatpush1.msra.mxu0 %v452
    %477 = vmatprep.subr.mxu0 0.0
    %478 = vmatpush1.msra.mxu0 %v453
    %479 = vmatprep.subr.mxu0 0.0
    %480 = vmatpush1.msra.mxu0 %v454
    %481 = vmatprep.subr.mxu0 0.0
    %482 = vmatpush1.msra.mxu0 %v455
    %483 = vmatprep.subr.mxu0 0.0
    %484 = vmatpush1.msra.mxu0 %v456
    %485 = vmatprep.subr.mxu0 0.0
    %486 = vmatpush1.msra.mxu0 %v457
    %487 = vmatprep.subr.mxu0 0.0
    %488 = vmatpush1.msra.mxu0 %v458
    %489 = vmatprep.subr.mxu0 0.0
    %490 = vmatpush1.msra.mxu0 %v459
    %491 = vmatprep.subr.mxu0 0.0
    %492 = vmatpush1.msra.mxu0 %v460
    %493 = vmatprep.subr.mxu0 0.0
    %494 = vmatpush1.msra.mxu0 %v461
    %495 = vmatprep.subr.mxu0 0.0
    %496 = vmatpush1.msra.mxu0 %v462
    %497 = vmatprep.subr.mxu0 0.0
    %498 = vmatpush1.msra.mxu0 %v463
    %499 = vmatprep.subr.mxu0 0.0
    %500 = vmatpush1.msra.mxu0 %v464
    %501 = vmatprep.subr.mxu0 0.0
    %502 = vmatpush1.msra.mxu0 %v465
    %503 = vmatprep.subr.mxu0 0.0
    %504 = vmatpush1.msra.mxu0 %v466
    %505 = vmatprep.subr.mxu0 0.0
    %506 = vmatpush1.msra.mxu0 %v467
    %507 = vmatprep.subr.mxu0 0.0
    %508 = vmatpush1.msra.mxu0 0.0
    %509 = vmatprep.subr.mxu0 0.0
    %510 = vmatpush1.msra.mxu0 0.0
    %511 = vmatprep.subr.mxu0 0.0
    %512 = vmatpush1.msra.mxu0 0.0
    %513 = vmatprep.subr.mxu0 0.0
    %514 = vmatpush1.msra.mxu0 0.0
    %515 = vmatprep.subr.mxu0 0.0
    %516 = vmatpush1.msra.mxu0 0.0
    %517 = vmatprep.subr.mxu0 0.0
    %518 = vmatpush1.msra.mxu0 0.0
    %519 = vmatprep.subr.mxu0 0.0
    %520 = vmatpush1.msra.mxu0 0.0
    %521 = vmatprep.subr.mxu0 0.0
    %522 = vmatpush1.msra.mxu0 0.0
    %523 = vmatprep.subr.mxu0 0.0
    %524 = vmatpush1.msra.mxu0 0.0
    %525 = vmatprep.subr.mxu0 0.0
    %526 = vmatpush1.msra.mxu0 0.0
    %527 = vmatprep.subr.mxu0 0.0
    %528 = vmatpush1.msra.mxu0 0.0
    %529 = vmatprep.subr.mxu0 0.0
    %530 = vmatpush1.msra.mxu0 0.0
    %531 = vmatprep.subr.mxu0 0.0
    %532 = vmatpush1.msra.mxu0 0.0
    %533 = vmatprep.subr.mxu0 0.0
    %534 = vmatpush1.msra.mxu0 0.0
    %535 = vmatprep.subr.mxu0 0.0
    %536 = vmatpush1.msra.mxu0 0.0
    %537 = vmatprep.subr.mxu0 0.0
    %538 = vmatpush1.msra.mxu0 0.0
    %539 = vmatprep.mubr.f32.mxu0 0.0
    %540 = vmatmul.mubr.f32.gmra.mrb[0].mxu0 %v448
    %v541 = vpop.f32.mrb[0].mxu0
    %v542 = vadd.f32 %v473, %v541
    %v543 = vpop.f32.mrb[0].mxu0
    %544 = vmatprep.mubr.f32.mxu0 0.0
    %545 = vmatmul.mubr.f32.gmra.mrb[0].mxu0 %v449
    %v546 = vpop.f32.mrb[0].mxu0
    %v547 = vadd.f32 %v473, %v546
    %v548 = vpop.f32.mrb[0].mxu0
    %549 = vdwg.mxu0
    %v550 = vsub.f32 0.0, %v542
    %v551 = vsub.f32 0.0, %v547
    %v552 = vmul.f32 %v550, 1.442695
    %v553 = vpow.pop %v552
    %v554 = vmul.f32 %v551, 1.442695
    %v555 = vpow.pop %v554
    %v556 = vadd.f32 %v553, 1.0
    %v557 = vadd.f32 %v555, 1.0
    %v558 = vrcp.pop %v556
    %v559 = vrcp.pop %v557
    %560 = vst [vmem:[%s10] sm:$0xff] %v558
    %561 = vst [vmem:[%s10 + $0x18] sm:$0xff] %v559
    %562 = vst [vmem:[%s10 + $0x8] sm:$0xff] %v303
    %563 = vst [vmem:[%s10 + $0x20] sm:$0xff] %v309
    %564 = vst [vmem:[%s10 + $0x10] sm:$0xff] %v317
    %565 = vst [vmem:[%s10 + $0x28] sm:$0xff] %v318
    // Predicated region
    $region50: #{vae_forward.1} parent=1 // pred_check
      _
    $region51: #{vae_forward.1} parent=1 // pred_check_branch
      %567 = sbr.rel (0) target = $region53
    $region52: #{vae_forward.1} parent=1 // pred_region
      _
    $region53: #{vae_forward.1} parent=1 // pred_fallthru
      _
    // Predicated region
    $region54: #{vae_forward.1} parent=1 // pred_check
      _
    $region55: #{vae_forward.1} parent=1 // pred_check_branch
      %569 = sbr.rel (0) target = $region57
    $region56: #{vae_forward.1} parent=1 // pred_region
      _
    $region57: #{vae_forward.1} parent=1 // pred_fallthru
      _
    %570 = vsyncpa [#allocation6], 1
    %571 = vsyncpa [#allocation8], 1
  %572 = vsyncmov [#allocation4]
  %s573 = vpop.sfrf %572
  %p574 = scmp.eq.s32.totalorder %s573, 0
  %p575 = pneg %p574
  %577 = shalt.err (%p575)
  %s578 = scalar_lea.sflag [#allocation4], 1
  %579 = vsyncmov %s578
  %s580 = vpop.sfrf %579
  %p581 = scmp.eq.s32.totalorder %s580, 0
  %p582 = pneg %p581
  %584 = shalt.err (%p582)

</llo_original>
